<compile_context>
chip_gen: v7x
topology: tpu7x:2x2x1
jax: 0.10.0
libtpu: 0.0.40
codegen_flags: <defaults>
</compile_context>

<pallas_src>
import functools

import jax
import jax.numpy as jnp
from jax.experimental import pallas as pl
from jax.experimental.pallas import tpu as pltpu
from jax.scipy.linalg import cho_factor, cho_solve


def _round_up(n, m):
    return ((n + m - 1) // m) * m


# ---------------------------------------------------------------------------
# Kernel
# ---------------------------------------------------------------------------
def _info_rnn_kernel(x_ref, h_ref, wx_ref, whur_ref, wsh_ref, b_ref, finv_ref,
                     out_ref, *, hp):
    """One batch-tile of the InformationRNN step.

    x_ref   : (TB, I_p)     compute dtype (bf16 by default)
    h_ref   : (TB, H_p)     f32 (kept f32 so the elementwise/residual path is exact)
    wx_ref  : (I_p, 3*H_p)  compute dtype  [W_update_x | W_reset_x | W_state_x]
    whur_ref: (H_p, 2*H_p)  compute dtype  [W_update_h | W_reset_h]
    wsh_ref : (H_p, H_p)    compute dtype   W_state_h
    b_ref   : (1, 3*H_p)    f32            [b_update | b_reset | b_state]
    finv_ref: (H_p, H_p)    f32            (fisher_matrix @ fisher_matrix.T)^-1
    out_ref : (TB, H_p)     f32
    """
    x = x_ref[...]
    h = h_ref[...]                    # f32
    h_c = h.astype(x.dtype)           # matmul operand (bf16 by default)

    # Fused x-side GEMM for all three gates (1 MXU op instead of 3), f32 acc.
    pre_x = jnp.dot(x, wx_ref[...], preferred_element_type=jnp.float32) + b_ref[...]
    # Fused h-side GEMM for update + reset gates (1 MXU op instead of 2).
    pre_h = jnp.dot(h_c, whur_ref[...], preferred_element_type=jnp.float32)

    # Elementwise gate math entirely in f32 (lane-tile-aligned 128-wide slices).
    upd = jax.nn.sigmoid(pre_x[:, :hp] + pre_h[:, :hp])
    rst = jax.nn.sigmoid(pre_x[:, hp:2 * hp] + pre_h[:, hp:])

    reset_hidden = (rst * h).astype(x.dtype)
    cand = jnp.tanh(pre_x[:, 2 * hp:]
                    + jnp.dot(reset_hidden, wsh_ref[...],
                              preferred_element_type=jnp.float32))

    # natural_grad = fisher^{-1} @ (cand - h); fisher^{-1} is symmetric, so it
    # equals (cand - h) @ fisher^{-1}.  Kept fully in f32.
    nat_grad = jnp.dot(cand - h, finv_ref[...], preferred_element_type=jnp.float32)

    # (1 - u) * h + u * (h + ng) == h + u * ng
    out_ref[...] = h + upd * nat_grad


# ---------------------------------------------------------------------------
# Parameter preparation (runs once per parameter set — hoisted out of forward)
# ---------------------------------------------------------------------------
def prepare_params(params, input_size, hidden_size, compute_dtype=jnp.bfloat16):
    I, H = input_size, hidden_size
    I_p = _round_up(I, 128)
    H_p = _round_up(H, 128)

    def split(w):  # torch Linear weight (H, I+H) -> x part (I, H), h part (H, H)
        w = jnp.asarray(w, jnp.float32)
        return w[:, :I].T, w[:, I:].T

    wux, wuh = split(params["w_update"])
    wrx, wrh = split(params["w_reset"])
    wsx, wsh = split(params["w_state"])

    def pad2(a, r, c):
        return jnp.pad(a, ((0, r - a.shape[0]), (0, c - a.shape[1])))

    # Fused, zero-padded, transposed (lane-dense) gate weights.
    wx_all = jnp.concatenate(
        [pad2(wux, I_p, H_p), pad2(wrx, I_p, H_p), pad2(wsx, I_p, H_p)], axis=1)
    wh_ur = jnp.concatenate(
        [pad2(wuh, H_p, H_p), pad2(wrh, H_p, H_p)], axis=1)
    wsh_p = pad2(wsh, H_p, H_p)

    def padb(b):
        b = jnp.asarray(b, jnp.float32).reshape(1, -1)
        return jnp.pad(b, ((0, 0), (0, H_p - b.shape[1])))

    b_all = jnp.concatenate(
        [padb(params["b_update"]), padb(params["b_reset"]), padb(params["b_state"])],
        axis=1)  # (1, 3*H_p) f32

    # Fisher metric inverse — SPD, so use a Cholesky-based inverse (more stable
    # than a generic inverse).  Parameter-only: computed once, reused forever.
    F = jnp.asarray(params["fisher_matrix"], jnp.float32)
    fisher = F @ F.T
    finv = cho_solve(cho_factor(fisher, lower=True), jnp.eye(H, dtype=jnp.float32))
    finv_p = pad2(finv, H_p, H_p)

    return {
        "input_size": I, "hidden_size": H, "I_p": I_p, "H_p": H_p,
        "wx_all": wx_all.astype(compute_dtype),
        "wh_ur": wh_ur.astype(compute_dtype),
        "wsh": wsh_p.astype(compute_dtype),
        "b_all": b_all,            # f32
        "finv": finv_p,            # f32
        "compute_dtype": compute_dtype,
    }


# ---------------------------------------------------------------------------
# Forward wrapper
# ---------------------------------------------------------------------------
def information_rnn_forward(x, h, prepared):
    """x: (B, I), h: (B, H) or None -> (new_h, new_h), both (B, H) float32."""
    I = prepared["input_size"]
    H = prepared["hidden_size"]
    I_p = prepared["I_p"]
    H_p = prepared["H_p"]
    cd = prepared["compute_dtype"]
    B = x.shape[0]

    if h is None:  # matches the module's h=None path
        h = jnp.zeros((B, H), jnp.float32)

    # Batch tiling: multiple of 8 sublanes; 256-wide tiles for large batches.
    tb = 256 if B > 256 else _round_up(max(B, 8), 8)
    B_p = _round_up(B, tb)

    # Zero-padding keeps the math exact in the real (B, H) sub-block.
    x_p = jnp.pad(x.astype(cd), ((0, B_p - B), (0, I_p - I)))
    h_p = jnp.pad(h.astype(jnp.float32), ((0, B_p - B), (0, H_p - H)))

    wx, whur, wsh = prepared["wx_all"], prepared["wh_ur"], prepared["wsh"]
    b_all, finv = prepared["b_all"], prepared["finv"]

    def act_spec(cols):
        return pl.BlockSpec((tb, cols), lambda b: (b, 0))

    def w_spec(shape):
        # Constant index_map -> weight stays VMEM-resident across batch tiles.
        return pl.BlockSpec(shape, lambda b: (0, 0))

    # Explicit VMEM budget (weights resident + double-buffered activation tiles),
    # clamped <= 48 MiB so it also fits v7x's 64 MiB physical VMEM.  For very
    # large H, tile the hidden dimension of the weights instead.
    weights_bytes = sum(int(a.size) * a.dtype.itemsize
                        for a in (wx, whur, wsh, b_all, finv))
    tile_bytes = tb * I_p * x_p.dtype.itemsize + 2 * tb * H_p * 4
    vmem_limit = int(min(max(2 * (weights_bytes + 2 * tile_bytes) + (4 << 20),
                             16 << 20), 48 << 20))

    new_h_p = pl.pallas_call(
        functools.partial(_info_rnn_kernel, hp=H_p),
        out_shape=jax.ShapeDtypeStruct((B_p, H_p), jnp.float32),
        grid=(B_p // tb,),
        in_specs=[act_spec(I_p),            # x
                  act_spec(H_p),            # h
                  w_spec(wx.shape),         # fused x-side gate weights
                  w_spec(whur.shape),       # fused h-side update/reset weights
                  w_spec(wsh.shape),        # state-gate h weights
                  w_spec(b_all.shape),      # fused biases
                  w_spec(finv.shape)],      # fisher^{-1}
        out_specs=act_spec(H_p),
        compiler_params=pltpu.CompilerParams(
            dimension_semantics=("parallel",),   # batch tiles are independent
            vmem_limit_bytes=vmem_limit),
    )(x_p, h_p, wx, whur, wsh, b_all, finv)

    new_h = new_h_p[:B, :H]
    return new_h, new_h


# ---------------------------------------------------------------------------
# Test harness
# ---------------------------------------------------------------------------
def make_params(key, input_size, hidden_size):
    ks = jax.random.split(key, 8)
    H, I = hidden_size, input_size
    # NOTE: the demo Fisher factor gets a diagonal boost so fisher = F @ F.T is
    # well-conditioned; with a raw randn factor the Gram matrix can be near
    # singular, which makes any finite-precision comparison (solve vs. inverse,
    # f32 vs. bf16) meaningless.  Test-harness values only; forward semantics
    # are unchanged.
    fisher_factor = (jax.random.normal(ks[0], (H, H), jnp.float32)
                     + 4.0 * jnp.sqrt(jnp.float32(H))
                     * jnp.eye(H, dtype=jnp.float32))
    return {
        "fisher_matrix": fisher_factor,
        "natural_params": jax.random.normal(ks[1], (H, I), jnp.float32),  # unused in forward
        "w_update": jax.random.normal(ks[2], (H, I + H), jnp.float32) * 0.1,
        "b_update": jax.random.normal(ks[3], (H,), jnp.float32) * 0.1,
        "w_reset": jax.random.normal(ks[4], (H, I + H), jnp.float32) * 0.1,
        "b_reset": jax.random.normal(ks[5], (H,), jnp.float32) * 0.1,
        "w_state": jax.random.normal(ks[6], (H, I + H), jnp.float32) * 0.1,
        "b_state": jax.random.normal(ks[7], (H,), jnp.float32) * 0.1,
    }


def reference_forward(x, h, params):
    """Pure-JAX float32 reference mirroring the PyTorch forward (solve-based)."""
    H = params["w_update"].shape[0]
    if h is None:
        h = jnp.zeros((x.shape[0], H), jnp.float32)
    combined = jnp.concatenate([x, h], axis=1)
    upd = jax.nn.sigmoid(combined @ params["w_update"].T + params["b_update"])
    rst = jax.nn.sigmoid(combined @ params["w_reset"].T + params["b_reset"])
    state_in = jnp.concatenate([x, rst * h], axis=1)
    cand = jnp.tanh(state_in @ params["w_state"].T + params["b_state"])
    fisher = params["fisher_matrix"] @ params["fisher_matrix"].T
    nat_grad = jnp.linalg.solve(fisher, (cand - h)[..., None])[..., 0]
    return (1.0 - upd) * h + upd * (h + nat_grad)


if __name__ == "__main__":
    B, I, H = 2, 16, 32
    key = jax.random.PRNGKey(0)
    k_p, k_x, k_h = jax.random.split(key, 3)
    params = make_params(k_p, I, H)
    prepared = prepare_params(params, I, H)  # hoisted, once per parameter set

    x = jax.random.normal(k_x, (B, I), jnp.float32)

    # h = None path of the module (zero initial hidden state).
    new_h, out = information_rnn_forward(x, None, prepared)
    jax.block_until_ready(new_h)
    ref = reference_forward(x, None, params)
    assert jnp.allclose(new_h, ref, atol=1e-2, rtol=1e-2), "mismatch (h=None)"
    assert jnp.allclose(out, new_h), "forward must return (new_h, new_h)"

    # Non-zero hidden state to exercise the h-side fused matmul path.
    h0 = jax.random.normal(k_h, (B, H), jnp.float32)
    new_h2, _ = information_rnn_forward(x, h0, prepared)
    jax.block_until_ready(new_h2)
    ref2 = reference_forward(x, h0, params)
    assert jnp.allclose(new_h2, ref2, atol=1e-2, rtol=1e-2), "mismatch (h given)"

    print("KERNEL_OK")
</pallas_src>

<mosaic_0001>
module attributes {stable_mosaic.version = 11 : i64} {
  func.func @_info_rnn_kernel(%arg0: i32, %arg1: memref<8x128xbf16, #tpu.memory_space<vmem>>, %arg2: memref<8x128xf32, #tpu.memory_space<vmem>>, %arg3: memref<128x384xbf16, #tpu.memory_space<vmem>>, %arg4: memref<128x256xbf16, #tpu.memory_space<vmem>>, %arg5: memref<128x128xbf16, #tpu.memory_space<vmem>>, %arg6: memref<1x384xf32, #tpu.memory_space<vmem>>, %arg7: memref<128x128xf32, #tpu.memory_space<vmem>>, %arg8: memref<8x128xf32, #tpu.memory_space<vmem>>) attributes {dimension_semantics = [#tpu.dimension_semantics<parallel>], iteration_bounds = array<i64: 1>, scalar_prefetch = 0 : i64, scratch_operands = 0 : i64, tpu.core_type = #tpu.core_type<tc>, window_params = [{transform_indices = @transform_0, window_bounds = array<i64: 8, 128>}, {transform_indices = @transform_1, window_bounds = array<i64: 8, 128>}, {pipeline_mode = #tpu.pipeline_mode<synchronous>, transform_indices = @transform_2, window_bounds = array<i64: 128, 384>}, {pipeline_mode = #tpu.pipeline_mode<synchronous>, transform_indices = @transform_3, window_bounds = array<i64: 128, 256>}, {pipeline_mode = #tpu.pipeline_mode<synchronous>, transform_indices = @transform_4, window_bounds = array<i64: 128, 128>}, {pipeline_mode = #tpu.pipeline_mode<synchronous>, transform_indices = @transform_5, window_bounds = array<i64: 1, 384>}, {pipeline_mode = #tpu.pipeline_mode<synchronous>, transform_indices = @transform_6, window_bounds = array<i64: 128, 128>}, {transform_indices = @transform_7, window_bounds = array<i64: 8, 128>}]} {
    %c0 = arith.constant 0 : index
    %c0_0 = arith.constant 0 : index
    %0 = vector.load %arg1[%c0, %c0_0] : memref<8x128xbf16, #tpu.memory_space<vmem>>, vector<8x128xbf16>
    %c0_1 = arith.constant 0 : index
    %c0_2 = arith.constant 0 : index
    %1 = vector.load %arg2[%c0_1, %c0_2] : memref<8x128xf32, #tpu.memory_space<vmem>>, vector<8x128xf32>
    %2 = arith.truncf %1 : vector<8x128xf32> to vector<8x128xbf16>
    %c0_3 = arith.constant 0 : index
    %c0_4 = arith.constant 0 : index
    %3 = vector.load %arg3[%c0_3, %c0_4] : memref<128x384xbf16, #tpu.memory_space<vmem>>, vector<128x384xbf16>
    %cst = arith.constant dense<0.000000e+00> : vector<8x384xf32>
    %4 = tpu.matmul %0, %3, %cst {dimension_numbers = #tpu.dot_dimension_numbers<[1], [0], [0], [1], [0, 0, 1, 1], [], []>} : vector<8x128xbf16>, vector<128x384xbf16>, vector<8x384xf32> -> vector<8x384xf32>
    %c0_5 = arith.constant 0 : index
    %c0_6 = arith.constant 0 : index
    %5 = vector.load %arg6[%c0_5, %c0_6] : memref<1x384xf32, #tpu.memory_space<vmem>>, vector<1x384xf32>
    %6 = vector.broadcast %5 : vector<1x384xf32> to vector<8x384xf32>
    %7 = arith.addf %4, %6 : vector<8x384xf32>
    %c0_7 = arith.constant 0 : index
    %c0_8 = arith.constant 0 : index
    %8 = vector.load %arg4[%c0_7, %c0_8] : memref<128x256xbf16, #tpu.memory_space<vmem>>, vector<128x256xbf16>
    %cst_9 = arith.constant dense<0.000000e+00> : vector<8x256xf32>
    %9 = tpu.matmul %2, %8, %cst_9 {dimension_numbers = #tpu.dot_dimension_numbers<[1], [0], [0], [1], [0, 0, 1, 1], [], []>} : vector<8x128xbf16>, vector<128x256xbf16>, vector<8x256xf32> -> vector<8x256xf32>
    %10 = vector.extract_strided_slice %7 {offsets = [0, 0], sizes = [8, 128], strides = [1, 1]} : vector<8x384xf32> to vector<8x128xf32>
    %11 = vector.extract_strided_slice %9 {offsets = [0, 0], sizes = [8, 128], strides = [1, 1]} : vector<8x256xf32> to vector<8x128xf32>
    %12 = arith.addf %10, %11 : vector<8x128xf32>
    %13 = arith.negf %12 : vector<8x128xf32>
    %14 = math.exp %13 : vector<8x128xf32>
    %cst_10 = arith.constant 1.000000e+00 : f32
    %15 = vector.broadcast %cst_10 : f32 to vector<8x128xf32>
    %16 = arith.addf %15, %14 : vector<8x128xf32>
    %17 = arith.divf %15, %16 : vector<8x128xf32>
    %18 = vector.extract_strided_slice %7 {offsets = [0, 128], sizes = [8, 128], strides = [1, 1]} : vector<8x384xf32> to vector<8x128xf32>
    %19 = vector.extract_strided_slice %9 {offsets = [0, 128], sizes = [8, 128], strides = [1, 1]} : vector<8x256xf32> to vector<8x128xf32>
    %20 = arith.addf %18, %19 : vector<8x128xf32>
    %21 = arith.negf %20 : vector<8x128xf32>
    %22 = math.exp %21 : vector<8x128xf32>
    %cst_11 = arith.constant 1.000000e+00 : f32
    %23 = vector.broadcast %cst_11 : f32 to vector<8x128xf32>
    %24 = arith.addf %23, %22 : vector<8x128xf32>
    %25 = arith.divf %23, %24 : vector<8x128xf32>
    %26 = arith.mulf %25, %1 : vector<8x128xf32>
    %27 = arith.truncf %26 : vector<8x128xf32> to vector<8x128xbf16>
    %28 = vector.extract_strided_slice %7 {offsets = [0, 256], sizes = [8, 128], strides = [1, 1]} : vector<8x384xf32> to vector<8x128xf32>
    %c0_12 = arith.constant 0 : index
    %c0_13 = arith.constant 0 : index
    %29 = vector.load %arg5[%c0_12, %c0_13] : memref<128x128xbf16, #tpu.memory_space<vmem>>, vector<128x128xbf16>
    %cst_14 = arith.constant dense<0.000000e+00> : vector<8x128xf32>
    %30 = tpu.matmul %27, %29, %cst_14 {dimension_numbers = #tpu.dot_dimension_numbers<[1], [0], [0], [1], [0, 0, 1, 1], [], []>} : vector<8x128xbf16>, vector<128x128xbf16>, vector<8x128xf32> -> vector<8x128xf32>
    %31 = arith.addf %28, %30 : vector<8x128xf32>
    %32 = math.tanh %31 : vector<8x128xf32>
    %33 = arith.subf %32, %1 : vector<8x128xf32>
    %c0_15 = arith.constant 0 : index
    %c0_16 = arith.constant 0 : index
    %34 = vector.load %arg7[%c0_15, %c0_16] : memref<128x128xf32, #tpu.memory_space<vmem>>, vector<128x128xf32>
    %cst_17 = arith.constant dense<0.000000e+00> : vector<8x128xf32>
    %35 = tpu.matmul %33, %34, %cst_17 {dimension_numbers = #tpu.dot_dimension_numbers<[1], [0], [0], [1], [0, 0, 1, 1], [], []>} : vector<8x128xf32>, vector<128x128xf32>, vector<8x128xf32> -> vector<8x128xf32>
    %36 = arith.mulf %17, %35 : vector<8x128xf32>
    %37 = arith.addf %1, %36 : vector<8x128xf32>
    %c0_18 = arith.constant 0 : index
    %c0_19 = arith.constant 0 : index
    %38 = vector.load %arg8[%c0_18, %c0_19] : memref<8x128xf32, #tpu.memory_space<vmem>>, vector<8x128xf32>
    tpu.vector_store %arg8[%c0_18, %c0_19], %37 {strides = array<i32>} : memref<8x128xf32, #tpu.memory_space<vmem>>, vector<8x128xf32>,
    return
  }
  func.func @transform_0(%arg0: i32) -> (i32, i32) {
    %c0_i32 = arith.constant 0 : i32
    %c0_i32_0 = arith.constant 0 : i32
    return %arg0, %c0_i32 : i32, i32
  }
  func.func @transform_1(%arg0: i32) -> (i32, i32) {
    %c0_i32 = arith.constant 0 : i32
    %c0_i32_0 = arith.constant 0 : i32
    return %arg0, %c0_i32 : i32, i32
  }
  func.func @transform_2(%arg0: i32) -> (i32, i32) {
    %c0_i32 = arith.constant 0 : i32
    %c0_i32_0 = arith.constant 0 : i32
    %c0_i32_1 = arith.constant 0 : i32
    return %c0_i32, %c0_i32_0 : i32, i32
  }
  func.func @transform_3(%arg0: i32) -> (i32, i32) {
    %c0_i32 = arith.constant 0 : i32
    %c0_i32_0 = arith.constant 0 : i32
    %c0_i32_1 = arith.constant 0 : i32
    return %c0_i32, %c0_i32_0 : i32, i32
  }
  func.func @transform_4(%arg0: i32) -> (i32, i32) {
    %c0_i32 = arith.constant 0 : i32
    %c0_i32_0 = arith.constant 0 : i32
    %c0_i32_1 = arith.constant 0 : i32
    return %c0_i32, %c0_i32_0 : i32, i32
  }
  func.func @transform_5(%arg0: i32) -> (i32, i32) {
    %c0_i32 = arith.constant 0 : i32
    %c0_i32_0 = arith.constant 0 : i32
    %c0_i32_1 = arith.constant 0 : i32
    return %c0_i32, %c0_i32_0 : i32, i32
  }
  func.func @transform_6(%arg0: i32) -> (i32, i32) {
    %c0_i32 = arith.constant 0 : i32
    %c0_i32_0 = arith.constant 0 : i32
    %c0_i32_1 = arith.constant 0 : i32
    return %c0_i32, %c0_i32_0 : i32, i32
  }
  func.func @transform_7(%arg0: i32) -> (i32, i32) {
    %c0_i32 = arith.constant 0 : i32
    %c0_i32_0 = arith.constant 0 : i32
    return %arg0, %c0_i32 : i32, i32
  }
}

</mosaic_0001>

<llo_original>
// kernel: tpu_custom_call.1
$region0: #{tpu_custom_call.1}
  #allocation0 [shape = 'u32[]', space=smem, size = 0x4, offset = 0x4, fixed_abs, tag = 'smem constant byte address 0x4 - core index']
  #allocation1 [shape = 'u32[144,128]{1,0:T(1,128)}', space=vmem, size = 0x12000, scoped, tag = 'internal scratch']
  %s0 = inlined_call_operand.hbm [shape: bf16[8,128], index: 0, kind: input, shape index: {}]
  %s1 = inlined_call_operand.hbm [shape: f32[8,128], index: 1, kind: input, shape index: {}]
  %s2 = inlined_call_operand.hbm [shape: bf16[128,384], index: 2, kind: input, shape index: {}]
  %s3 = inlined_call_operand.hbm [shape: bf16[128,256], index: 3, kind: input, shape index: {}]
  %s4 = inlined_call_operand.hbm [shape: bf16[128,128], index: 4, kind: input, shape index: {}]
  %s5 = inlined_call_operand.vmem [shape: f32[1,384], index: 5, kind: input, shape index: {}]
  %s6 = inlined_call_operand.hbm [shape: f32[128,128], index: 6, kind: input, shape index: {}]
  %s7 = inlined_call_operand.hbm [shape: f32[8,128], index: 7, kind: output, shape index: {}]
  %s8 = sld [smem:[#allocation0]]
  $region62: #{tpu_custom_call.1} parent=0
    _
  %s10 = ssub.s32 1, %s8
  %s11 = scalar_select 0, %s10, %s8
  $region1: #{tpu_custom_call.1} parent=0
    #allocation2 [shape = 'u8[2048]{0}', space=vmem, size = 0x800, scoped, tag = 'input window, operand 0, single buffered']
    #allocation3 [shape = 's32[1]{0}', space=sflag, size = 0x4, scoped, tag = 'scoped memory for tpu_custom_call.1']
    #allocation4 [shape = 's32[1]{0}', space=sflag, size = 0x4, scoped, tag = 'scoped memory for tpu_custom_call.1']
    #allocation5 [shape = 'u8[4096]{0}', space=vmem, size = 0x1000, scoped, tag = 'input window, operand 1, single buffered']
    #allocation6 [shape = 's32[1]{0}', space=sflag, size = 0x4, scoped, tag = 'scoped memory for tpu_custom_call.1']
    #allocation7 [shape = 'u8[98304]{0}', space=vmem, size = 0x18000, scoped, tag = 'input window, operand 2, single buffered']
    #allocation8 [shape = 'u8[65536]{0}', space=vmem, size = 0x10000, scoped, tag = 'input window, operand 3, single buffered']
    #allocation9 [shape = 's32[1]{0}', space=sflag, size = 0x4, scoped, tag = 'scoped memory for tpu_custom_call.1']
    #allocation10 [shape = 'u8[32768]{0}', space=vmem, size = 0x8000, scoped, tag = 'input window, operand 4, single buffered']
    #allocation11 [shape = 'u8[65536]{0}', space=vmem, size = 0x10000, scoped, tag = 'input window, operand 6, single buffered']
    #allocation12 [shape = 's32[1]{0}', space=sflag, size = 0x4, scoped, tag = 'scoped memory for tpu_custom_call.1']
    #allocation13 [shape = 'u8[4096]{0}', space=vmem, size = 0x1000, scoped, tag = 'output window, operand 0, single buffered']
    %12 = vsyncpa [#allocation3], 0
    %13 = vsyncpa [#allocation6], 0
    %14 = vsyncpa [#allocation9], 0
    %15 = vsyncpa [#allocation12], 0
    %16 = vsyncpa [#allocation4], 0
    // Predicated region
    $region2: #{tpu_custom_call.1} parent=1 // pred_check
      _
    $region3: #{tpu_custom_call.1} parent=1 // pred_check_branch
      %18 = sbr.rel (0) target = $region5
    $region4: #{tpu_custom_call.1} parent=1 // pred_region
      %s20 = ssub.s32 64, 64
      %21 = vsyncadd [#allocation3], %s20
      %s23 = sshll.u32 [#allocation2], 4
      %s24 = int_to_ptr.vmem [resolvable:$true] %s23
      %26 = dma.hbm_to_vmem [thread:$0]  %s0, 64, %s24, [#allocation3]
    $region5: #{tpu_custom_call.1} parent=1 // pred_fallthru
      _
    // Predicated region
    $region6: #{tpu_custom_call.1} parent=1 // pred_check
      _
    $region7: #{tpu_custom_call.1} parent=1 // pred_check_branch
      %28 = sbr.rel (0) target = $region9
    $region8: #{tpu_custom_call.1} parent=1 // pred_region
      %s30 = ssub.s32 128, 128
      %31 = vsyncadd [#allocation6], %s30
      %s33 = sshll.u32 [#allocation5], 4
      %s34 = int_to_ptr.vmem [resolvable:$true] %s33
      %36 = dma.hbm_to_vmem [thread:$0]  %s1, 128, %s34, [#allocation6]
    $region9: #{tpu_custom_call.1} parent=1 // pred_fallthru
      _
    // Predicated region
    $region10: #{tpu_custom_call.1} parent=1 // pred_check
      _
    $region11: #{tpu_custom_call.1} parent=1 // pred_check_branch
      %38 = sbr.rel (0) target = $region13
    $region12: #{tpu_custom_call.1} parent=1 // pred_region
      %s40 = ssub.s32 3072, 3072
      %41 = vsyncadd [#allocation6], %s40
      %s42 = sshll.u32 [#allocation7], 4
      %s43 = int_to_ptr.vmem [resolvable:$true] %s42
      %48 = dma.hbm_to_vmem [thread:$0]  %s2, 3072, %s43, [#allocation6], 192, 192, 12
    $region13: #{tpu_custom_call.1} parent=1 // pred_fallthru
      _
    // Predicated region
    $region14: #{tpu_custom_call.1} parent=1 // pred_check
      _
    $region15: #{tpu_custom_call.1} parent=1 // pred_check_branch
      %50 = sbr.rel (0) target = $region17
    $region16: #{tpu_custom_call.1} parent=1 // pred_region
      %s52 = ssub.s32 2048, 2048
      %53 = vsyncadd [#allocation9], %s52
      %s54 = sshll.u32 [#allocation8], 4
      %s55 = int_to_ptr.vmem [resolvable:$true] %s54
      %60 = dma.hbm_to_vmem [thread:$0]  %s3, 2048, %s55, [#allocation9], 128, 128, 8
    $region17: #{tpu_custom_call.1} parent=1 // pred_fallthru
      _
    // Predicated region
    $region18: #{tpu_custom_call.1} parent=1 // pred_check
      _
    $region19: #{tpu_custom_call.1} parent=1 // pred_check_branch
      %62 = sbr.rel (0) target = $region21
    $region20: #{tpu_custom_call.1} parent=1 // pred_region
      %s64 = ssub.s32 1024, 1024
      %65 = vsyncadd [#allocation9], %s64
      %s66 = sshll.u32 [#allocation10], 4
      %s67 = int_to_ptr.vmem [resolvable:$true] %s66
      %72 = dma.hbm_to_vmem [thread:$0]  %s4, 1024, %s67, [#allocation9], 64, 64, 4
    $region21: #{tpu_custom_call.1} parent=1 // pred_fallthru
      _
    // Predicated region
    $region22: #{tpu_custom_call.1} parent=1 // pred_check
      _
    $region23: #{tpu_custom_call.1} parent=1 // pred_check_branch
      %74 = sbr.rel (0) target = $region25
    $region24: #{tpu_custom_call.1} parent=1 // pred_region
      _
    $region25: #{tpu_custom_call.1} parent=1 // pred_fallthru
      _
    // Predicated region
    $region26: #{tpu_custom_call.1} parent=1 // pred_check
      _
    $region27: #{tpu_custom_call.1} parent=1 // pred_check_branch
      %76 = sbr.rel (0) target = $region29
    $region28: #{tpu_custom_call.1} parent=1 // pred_region
      %s78 = ssub.s32 2048, 2048
      %79 = vsyncadd [#allocation12], %s78
      %s80 = sshll.u32 [#allocation11], 4
      %s81 = int_to_ptr.vmem [resolvable:$true] %s80
      %86 = dma.hbm_to_vmem [thread:$0]  %s6, 2048, %s81, [#allocation12], 128, 128, 8
    $region29: #{tpu_custom_call.1} parent=1 // pred_fallthru
      _
    // Predicated region
    $region30: #{tpu_custom_call.1} parent=1 // pred_check
      _
    $region31: #{tpu_custom_call.1} parent=1 // pred_check_branch
      %88 = sbr.rel (0) target = $region33
    $region32: #{tpu_custom_call.1} parent=1 // pred_region
      %89 = dma.done [#allocation3], 64
    $region33: #{tpu_custom_call.1} parent=1 // pred_fallthru
      _
    // Predicated region
    $region34: #{tpu_custom_call.1} parent=1 // pred_check
      _
    $region35: #{tpu_custom_call.1} parent=1 // pred_check_branch
      %91 = sbr.rel (0) target = $region37
    $region36: #{tpu_custom_call.1} parent=1 // pred_region
      %92 = dma.done [#allocation6], 128
    $region37: #{tpu_custom_call.1} parent=1 // pred_fallthru
      _
    // Predicated region
    $region38: #{tpu_custom_call.1} parent=1 // pred_check
      _
    $region39: #{tpu_custom_call.1} parent=1 // pred_check_branch
      %94 = sbr.rel (0) target = $region41
    $region40: #{tpu_custom_call.1} parent=1 // pred_region
      %95 = dma.done [#allocation6], 3072
    $region41: #{tpu_custom_call.1} parent=1 // pred_fallthru
      _
    // Predicated region
    $region42: #{tpu_custom_call.1} parent=1 // pred_check
      _
    $region43: #{tpu_custom_call.1} parent=1 // pred_check_branch
      %97 = sbr.rel (0) target = $region45
    $region44: #{tpu_custom_call.1} parent=1 // pred_region
      %98 = dma.done [#allocation9], 2048
    $region45: #{tpu_custom_call.1} parent=1 // pred_fallthru
      _
    // Predicated region
    $region46: #{tpu_custom_call.1} parent=1 // pred_check
      _
    $region47: #{tpu_custom_call.1} parent=1 // pred_check_branch
      %100 = sbr.rel (0) target = $region49
    $region48: #{tpu_custom_call.1} parent=1 // pred_region
      %101 = dma.done [#allocation9], 1024
    $region49: #{tpu_custom_call.1} parent=1 // pred_fallthru
      _
    // Predicated region
    $region50: #{tpu_custom_call.1} parent=1 // pred_check
      _
    $region51: #{tpu_custom_call.1} parent=1 // pred_check_branch
      %103 = sbr.rel (0) target = $region53
    $region52: #{tpu_custom_call.1} parent=1 // pred_region
      %104 = dma.done [#allocation12], 2048
    $region53: #{tpu_custom_call.1} parent=1 // pred_fallthru
      _
    %v106 = vld [vmem:[#allocation2] sm:$0xf]
    %v107 = vld [vmem:[#allocation5] sm:$0xff]
    %v108 = vpack.c.bf16 %v107, %v107
    %v109 = vld [vmem:[#allocation7] sm:$0xff]
    %v110 = vld [vmem:[#allocation7 + $0x8] sm:$0xf]
    %v111 = vld [vmem:[#allocation7 + $0xc] sm:$0xff]
    %v112 = vld [vmem:[#allocation7 + $0x14] sm:$0xf]
    %v113 = vld [vmem:[#allocation7 + $0x18] sm:$0xff]
    %v114 = vld [vmem:[#allocation7 + $0x20] sm:$0xf]
    %v115 = vld [vmem:[#allocation7 + $0x24] sm:$0xff]
    %v116 = vld [vmem:[#allocation7 + $0x2c] sm:$0xf]
    %v117 = vld [vmem:[#allocation7 + $0x30] sm:$0xff]
    %v118 = vld [vmem:[#allocation7 + $0x38] sm:$0xf]
    %v119 = vld [vmem:[#allocation7 + $0x3c] sm:$0xff]
    %v120 = vld [vmem:[#allocation7 + $0x44] sm:$0xf]
    %v121 = vld [vmem:[#allocation7 + $0x48] sm:$0xff]
    %v122 = vld [vmem:[#allocation7 + $0x50] sm:$0xf]
    %v123 = vld [vmem:[#allocation7 + $0x54] sm:$0xff]
    %v124 = vld [vmem:[#allocation7 + $0x5c] sm:$0xf]
    %v125 = vld [vmem:[#allocation7 + $0x60] sm:$0xff]
    %v126 = vld [vmem:[#allocation7 + $0x68] sm:$0xf]
    %v127 = vld [vmem:[#allocation7 + $0x6c] sm:$0xff]
    %v128 = vld [vmem:[#allocation7 + $0x74] sm:$0xf]
    %v129 = vld [vmem:[#allocation7 + $0x78] sm:$0xff]
    %v130 = vld [vmem:[#allocation7 + $0x80] sm:$0xf]
    %v131 = vld [vmem:[#allocation7 + $0x84] sm:$0xff]
    %v132 = vld [vmem:[#allocation7 + $0x8c] sm:$0xf]
    %v133 = vld [vmem:[#allocation7 + $0x90] sm:$0xff]
    %v134 = vld [vmem:[#allocation7 + $0x98] sm:$0xf]
    %v135 = vld [vmem:[#allocation7 + $0x9c] sm:$0xff]
    %v136 = vld [vmem:[#allocation7 + $0xa4] sm:$0xf]
    %v137 = vld [vmem:[#allocation7 + $0xa8] sm:$0xff]
    %v138 = vld [vmem:[#allocation7 + $0xb0] sm:$0xf]
    %v139 = vld [vmem:[#allocation7 + $0xb4] sm:$0xff]
    %v140 = vld [vmem:[#allocation7 + $0xbc] sm:$0xf]
    %v141 = vld [vmem:[%s5] sm:$0x7]
    %v143 = vlaneseq
    %v144 = vshrl.u32 %v143, 7
    %v145 = vsub.s32 0, %v144
    %v146 = vrot.slane %v141, %v145
    %v147 = vlaneseq
    %v148 = vshrl.u32 %v147, 7
    %v149 = vsub.s32 1, %v148
    %v150 = vrot.slane %v141, %v149
    %v151 = vlaneseq
    %v152 = vshrl.u32 %v151, 7
    %v153 = vsub.s32 2, %v152
    %v154 = vrot.slane %v141, %v153
    %v190 = vunpack.c.l.b16 %v109
    %v191 = vunpack.c.h.b16 %v109
    %v192 = vunpack.c.l.b16 %v110
    %v193 = vunpack.c.l.b16 %v111
    %v194 = vunpack.c.h.b16 %v111
    %v195 = vunpack.c.l.b16 %v112
    %v196 = vunpack.c.l.b16 %v113
    %v197 = vunpack.c.h.b16 %v113
    %v198 = vunpack.c.l.b16 %v114
    %v199 = vunpack.c.l.b16 %v115
    %v200 = vunpack.c.h.b16 %v115
    %v201 = vunpack.c.l.b16 %v116
    %v202 = vunpack.c.l.b16 %v117
    %v203 = vunpack.c.h.b16 %v117
    %v204 = vunpack.c.l.b16 %v118
    %v205 = vunpack.c.l.b16 %v119
    %v206 = vunpack.c.h.b16 %v119
    %v207 = vunpack.c.l.b16 %v120
    %v208 = vunpack.c.l.b16 %v121
    %v209 = vunpack.c.h.b16 %v121
    %v210 = vunpack.c.l.b16 %v122
    %v211 = vunpack.c.l.b16 %v123
    %v212 = vunpack.c.h.b16 %v123
    %v213 = vunpack.c.l.b16 %v124
    %v214 = vunpack.c.l.b16 %v125
    %v215 = vunpack.c.h.b16 %v125
    %v216 = vunpack.c.l.b16 %v126
    %v217 = vunpack.c.l.b16 %v127
    %v218 = vunpack.c.h.b16 %v127
    %v219 = vunpack.c.l.b16 %v128
    %v220 = vunpack.c.l.b16 %v129
    %v221 = vunpack.c.h.b16 %v129
    %v222 = vunpack.c.l.b16 %v130
    %v223 = vunpack.c.l.b16 %v131
    %v224 = vunpack.c.h.b16 %v131
    %v225 = vunpack.c.l.b16 %v132
    %v226 = vunpack.c.l.b16 %v133
    %v227 = vunpack.c.h.b16 %v133
    %v228 = vunpack.c.l.b16 %v134
    %v229 = vunpack.c.l.b16 %v135
    %v230 = vunpack.c.h.b16 %v135
    %v231 = vunpack.c.l.b16 %v136
    %v232 = vunpack.c.l.b16 %v137
    %v233 = vunpack.c.h.b16 %v137
    %v234 = vunpack.c.l.b16 %v138
    %v235 = vunpack.c.l.b16 %v139
    %v236 = vunpack.c.h.b16 %v139
    %v237 = vunpack.c.l.b16 %v140
    %v238 = vpack.c.b16 %v193, %v190
    %v239 = vpack.c.b16 %v194, %v191
    %v240 = vpack.c.b16 %v195, %v192
    %v241 = vpack.c.b16 %v199, %v196
    %v242 = vpack.c.b16 %v200, %v197
    %v243 = vpack.c.b16 %v201, %v198
    %v244 = vpack.c.b16 %v205, %v202
    %v245 = vpack.c.b16 %v206, %v203
    %v246 = vpack.c.b16 %v207, %v204
    %v247 = vpack.c.b16 %v211, %v208
    %v248 = vpack.c.b16 %v212, %v209
    %v249 = vpack.c.b16 %v213, %v210
    %v250 = vpack.c.b16 %v217, %v214
    %v251 = vpack.c.b16 %v218, %v215
    %v252 = vpack.c.b16 %v219, %v216
    %v253 = vpack.c.b16 %v223, %v220
    %v254 = vpack.c.b16 %v224, %v221
    %v255 = vpack.c.b16 %v225, %v222
    %v256 = vpack.c.b16 %v229, %v226
    %v257 = vpack.c.b16 %v230, %v227
    %v258 = vpack.c.b16 %v231, %v228
    %v259 = vpack.c.b16 %v235, %v232
    %v260 = vpack.c.b16 %v236, %v233
    %v261 = vpack.c.b16 %v237, %v234
    %286 = vmatprep.subr.bf16.mxu0 %v239
    %287 = vmatpush1.bf16.msra.mxu0 %v238
    %288 = vmatprep.subr.bf16.mxu0 %v242
    %289 = vmatpush1.bf16.msra.mxu0 %v241
    %290 = vmatprep.subr.bf16.mxu0 %v245
    %291 = vmatpush1.bf16.msra.mxu0 %v244
    %292 = vmatprep.subr.bf16.mxu0 %v248
    %293 = vmatpush1.bf16.msra.mxu0 %v247
    %294 = vmatprep.subr.bf16.mxu0 %v251
    %295 = vmatpush1.bf16.msra.mxu0 %v250
    %296 = vmatprep.subr.bf16.mxu0 %v254
    %297 = vmatpush1.bf16.msra.mxu0 %v253
    %298 = vmatprep.subr.bf16.mxu0 %v257
    %299 = vmatpush1.bf16.msra.mxu0 %v256
    %300 = vmatprep.subr.bf16.mxu0 %v260
    %301 = vmatpush1.bf16.msra.mxu0 %v259
    %302 = vmatprep.subr.bf16.mxu0 0
    %303 = vmatpush1.bf16.msra.mxu0 0
    %304 = vmatprep.subr.bf16.mxu0 0
    %305 = vmatpush1.bf16.msra.mxu0 0
    %306 = vmatprep.subr.bf16.mxu0 0
    %307 = vmatpush1.bf16.msra.mxu0 0
    %308 = vmatprep.subr.bf16.mxu0 0
    %309 = vmatpush1.bf16.msra.mxu0 0
    %310 = vmatprep.subr.bf16.mxu0 0
    %311 = vmatpush1.bf16.msra.mxu0 0
    %312 = vmatprep.subr.bf16.mxu0 0
    %313 = vmatpush1.bf16.msra.mxu0 0
    %314 = vmatprep.subr.bf16.mxu0 0
    %315 = vmatpush1.bf16.msra.mxu0 0
    %316 = vmatprep.subr.bf16.mxu0 0
    %317 = vmatpush1.bf16.msra.mxu0 0
    %318 = vmatprep.mubr.bf16.mxu0 0
    %319 = vmatmul.mubr.bf16.gmra.mrb[0].mxu0 %v106
    %v320 = vpop.f32.mrb[0].mxu0
    %v321 = vadd.f32 %v146, %v320
    %v322 = vpop.f32.mrb[0].mxu0
    %v323 = vadd.f32 %v150, %v322
    %v324 = vpop.f32.mrb[0].mxu0
    %v325 = vpop.f32.mrb[0].mxu0
    %326 = vdwg.mxu0
    %327 = vmatprep.subr.bf16.mxu0 0
    %328 = vmatpush1.bf16.msra.mxu0 %v240
    %329 = vmatprep.subr.bf16.mxu0 0
    %330 = vmatpush1.bf16.msra.mxu0 %v243
    %331 = vmatprep.subr.bf16.mxu0 0
    %332 = vmatpush1.bf16.msra.mxu0 %v246
    %333 = vmatprep.subr.bf16.mxu0 0
    %334 = vmatpush1.bf16.msra.mxu0 %v249
    %335 = vmatprep.subr.bf16.mxu0 0
    %336 = vmatpush1.bf16.msra.mxu0 %v252
    %337 = vmatprep.subr.bf16.mxu0 0
    %338 = vmatpush1.bf16.msra.mxu0 %v255
    %339 = vmatprep.subr.bf16.mxu0 0
    %340 = vmatpush1.bf16.msra.mxu0 %v258
    %341 = vmatprep.subr.bf16.mxu0 0
    %342 = vmatpush1.bf16.msra.mxu0 %v261
    %343 = vmatprep.subr.bf16.mxu0 0
    %344 = vmatpush1.bf16.msra.mxu0 0
    %345 = vmatprep.subr.bf16.mxu0 0
    %346 = vmatpush1.bf16.msra.mxu0 0
    %347 = vmatprep.subr.bf16.mxu0 0
    %348 = vmatpush1.bf16.msra.mxu0 0
    %349 = vmatprep.subr.bf16.mxu0 0
    %350 = vmatpush1.bf16.msra.mxu0 0
    %351 = vmatprep.subr.bf16.mxu0 0
    %352 = vmatpush1.bf16.msra.mxu0 0
    %353 = vmatprep.subr.bf16.mxu0 0
    %354 = vmatpush1.bf16.msra.mxu0 0
    %355 = vmatprep.subr.bf16.mxu0 0
    %356 = vmatpush1.bf16.msra.mxu0 0
    %357 = vmatprep.subr.bf16.mxu0 0
    %358 = vmatpush1.bf16.msra.mxu0 0
    %359 = vmatprep.mubr.bf16.mxu0 0
    %360 = vmatmul.mubr.bf16.gmra.mrb[0].mxu0 %v106
    %v361 = vpop.f32.mrb[0].mxu0
    %v362 = vadd.f32 %v154, %v361
    %v363 = vpop.f32.mrb[0].mxu0
    %v364 = vpop.f32.mrb[0].mxu0
    %v365 = vpop.f32.mrb[0].mxu0
    %366 = vdwg.mxu0
    %v367 = vld [vmem:[#allocation8] sm:$0xff]
    %v368 = vld [vmem:[#allocation8 + $0x8] sm:$0xff]
    %v369 = vld [vmem:[#allocation8 + $0x10] sm:$0xff]
    %v370 = vld [vmem:[#allocation8 + $0x18] sm:$0xff]
    %v371 = vld [vmem:[#allocation8 + $0x20] sm:$0xff]
    %v372 = vld [vmem:[#allocation8 + $0x28] sm:$0xff]
    %v373 = vld [vmem:[#allocation8 + $0x30] sm:$0xff]
    %v374 = vld [vmem:[#allocation8 + $0x38] sm:$0xff]
    %v375 = vld [vmem:[#allocation8 + $0x40] sm:$0xff]
    %v376 = vld [vmem:[#allocation8 + $0x48] sm:$0xff]
    %v377 = vld [vmem:[#allocation8 + $0x50] sm:$0xff]
    %v378 = vld [vmem:[#allocation8 + $0x58] sm:$0xff]
    %v379 = vld [vmem:[#allocation8 + $0x60] sm:$0xff]
    %v380 = vld [vmem:[#allocation8 + $0x68] sm:$0xff]
    %v381 = vld [vmem:[#allocation8 + $0x70] sm:$0xff]
    %v382 = vld [vmem:[#allocation8 + $0x78] sm:$0xff]
    %v399 = vunpack.c.l.b16 %v367
    %v400 = vunpack.c.h.b16 %v367
    %v401 = vunpack.c.l.b16 %v368
    %v402 = vunpack.c.h.b16 %v368
    %v403 = vunpack.c.l.b16 %v369
    %v404 = vunpack.c.h.b16 %v369
    %v405 = vunpack.c.l.b16 %v370
    %v406 = vunpack.c.h.b16 %v370
    %v407 = vunpack.c.l.b16 %v371
    %v408 = vunpack.c.h.b16 %v371
    %v409 = vunpack.c.l.b16 %v372
    %v410 = vunpack.c.h.b16 %v372
    %v411 = vunpack.c.l.b16 %v373
    %v412 = vunpack.c.h.b16 %v373
    %v413 = vunpack.c.l.b16 %v374
    %v414 = vunpack.c.h.b16 %v374
    %v415 = vunpack.c.l.b16 %v375
    %v416 = vunpack.c.h.b16 %v375
    %v417 = vunpack.c.l.b16 %v376
    %v418 = vunpack.c.h.b16 %v376
    %v419 = vunpack.c.l.b16 %v377
    %v420 = vunpack.c.h.b16 %v377
    %v421 = vunpack.c.l.b16 %v378
    %v422 = vunpack.c.h.b16 %v378
    %v423 = vunpack.c.l.b16 %v379
    %v424 = vunpack.c.h.b16 %v379
    %v425 = vunpack.c.l.b16 %v380
    %v426 = vunpack.c.h.b16 %v380
    %v427 = vunpack.c.l.b16 %v381
    %v428 = vunpack.c.h.b16 %v381
    %v429 = vunpack.c.l.b16 %v382
    %v430 = vunpack.c.h.b16 %v382
    %v431 = vpack.c.b16 %v401, %v399
    %v432 = vpack.c.b16 %v402, %v400
    %v433 = vpack.c.b16 %v405, %v403
    %v434 = vpack.c.b16 %v406, %v404
    %v435 = vpack.c.b16 %v409, %v407
    %v436 = vpack.c.b16 %v410, %v408
    %v437 = vpack.c.b16 %v413, %v411
    %v438 = vpack.c.b16 %v414, %v412
    %v439 = vpack.c.b16 %v417, %v415
    %v440 = vpack.c.b16 %v418, %v416
    %v441 = vpack.c.b16 %v421, %v419
    %v442 = vpack.c.b16 %v422, %v420
    %v443 = vpack.c.b16 %v425, %v423
    %v444 = vpack.c.b16 %v426, %v424
    %v445 = vpack.c.b16 %v429, %v427
    %v446 = vpack.c.b16 %v430, %v428
    %463 = vmatprep.subr.bf16.mxu0 %v432
    %464 = vmatpush1.bf16.msra.mxu0 %v431
    %465 = vmatprep.subr.bf16.mxu0 %v434
    %466 = vmatpush1.bf16.msra.mxu0 %v433
    %467 = vmatprep.subr.bf16.mxu0 %v436
    %468 = vmatpush1.bf16.msra.mxu0 %v435
    %469 = vmatprep.subr.bf16.mxu0 %v438
    %470 = vmatpush1.bf16.msra.mxu0 %v437
    %471 = vmatprep.subr.bf16.mxu0 %v440
    %472 = vmatpush1.bf16.msra.mxu0 %v439
    %473 = vmatprep.subr.bf16.mxu0 %v442
    %474 = vmatpush1.bf16.msra.mxu0 %v441
    %475 = vmatprep.subr.bf16.mxu0 %v444
    %476 = vmatpush1.bf16.msra.mxu0 %v443
    %477 = vmatprep.subr.bf16.mxu0 %v446
    %478 = vmatpush1.bf16.msra.mxu0 %v445
    %479 = vmatprep.subr.bf16.mxu0 0
    %480 = vmatpush1.bf16.msra.mxu0 0
    %481 = vmatprep.subr.bf16.mxu0 0
    %482 = vmatpush1.bf16.msra.mxu0 0
    %483 = vmatprep.subr.bf16.mxu0 0
    %484 = vmatpush1.bf16.msra.mxu0 0
    %485 = vmatprep.subr.bf16.mxu0 0
    %486 = vmatpush1.bf16.msra.mxu0 0
    %487 = vmatprep.subr.bf16.mxu0 0
    %488 = vmatpush1.bf16.msra.mxu0 0
    %489 = vmatprep.subr.bf16.mxu0 0
    %490 = vmatpush1.bf16.msra.mxu0 0
    %491 = vmatprep.subr.bf16.mxu0 0
    %492 = vmatpush1.bf16.msra.mxu0 0
    %493 = vmatprep.subr.bf16.mxu0 0
    %494 = vmatpush1.bf16.msra.mxu0 0
    %495 = vmatprep.mubr.bf16.mxu0 0
    %496 = vmatmul.mubr.bf16.gmra.mrb[0].mxu0 %v108
    %v497 = vpop.f32.mrb[0].mxu0
    %v498 = vadd.f32 0.0, %v497
    %v499 = vpop.f32.mrb[0].mxu0
    %v500 = vadd.f32 0.0, %v499
    %v501 = vpop.f32.mrb[0].mxu0
    %v502 = vpop.f32.mrb[0].mxu0
    %503 = vdwg.mxu0
    %v504 = vadd.f32 %v321, %v498
    %v505 = vxor.u32 %v504, 2147483648
    %v506 = vmul.f32 %v505, 1.442695
    %v507 = vpow.pop %v506
    %v508 = vadd.f32 %v507, 1.0
    %v509 = vrcp.pop %v508
    %v510 = vmul.f32 1.0, %v509
    %v511 = vadd.f32 %v323, %v500
    %v512 = vxor.u32 %v511, 2147483648
    %v513 = vmul.f32 %v512, 1.442695
    %v514 = vpow.pop %v513
    %v515 = vadd.f32 %v514, 1.0
    %v516 = vrcp.pop %v515
    %v517 = vmul.f32 1.0, %v516
    %v518 = vmul.f32 %v517, %v107
    %v519 = vpack.c.bf16 %v518, %v518
    %v520 = vld [vmem:[#allocation10] sm:$0xf]
    %v521 = vld [vmem:[#allocation10 + $0x4] sm:$0xf]
    %v522 = vld [vmem:[#allocation10 + $0x8] sm:$0xf]
    %v523 = vld [vmem:[#allocation10 + $0xc] sm:$0xf]
    %v524 = vld [vmem:[#allocation10 + $0x10] sm:$0xf]
    %v525 = vld [vmem:[#allocation10 + $0x14] sm:$0xf]
    %v526 = vld [vmem:[#allocation10 + $0x18] sm:$0xf]
    %v527 = vld [vmem:[#allocation10 + $0x1c] sm:$0xf]
    %v528 = vld [vmem:[#allocation10 + $0x20] sm:$0xf]
    %v529 = vld [vmem:[#allocation10 + $0x24] sm:$0xf]
    %v530 = vld [vmem:[#allocation10 + $0x28] sm:$0xf]
    %v531 = vld [vmem:[#allocation10 + $0x2c] sm:$0xf]
    %v532 = vld [vmem:[#allocation10 + $0x30] sm:$0xf]
    %v533 = vld [vmem:[#allocation10 + $0x34] sm:$0xf]
    %v534 = vld [vmem:[#allocation10 + $0x38] sm:$0xf]
    %v535 = vld [vmem:[#allocation10 + $0x3c] sm:$0xf]
    %v552 = vunpack.c.l.b16 %v520
    %v553 = vunpack.c.l.b16 %v521
    %v554 = vunpack.c.l.b16 %v522
    %v555 = vunpack.c.l.b16 %v523
    %v556 = vunpack.c.l.b16 %v524
    %v557 = vunpack.c.l.b16 %v525
    %v558 = vunpack.c.l.b16 %v526
    %v559 = vunpack.c.l.b16 %v527
    %v560 = vunpack.c.l.b16 %v528
    %v561 = vunpack.c.l.b16 %v529
    %v562 = vunpack.c.l.b16 %v530
    %v563 = vunpack.c.l.b16 %v531
    %v564 = vunpack.c.l.b16 %v532
    %v565 = vunpack.c.l.b16 %v533
    %v566 = vunpack.c.l.b16 %v534
    %v567 = vunpack.c.l.b16 %v535
    %v568 = vpack.c.b16 %v553, %v552
    %v569 = vpack.c.b16 %v555, %v554
    %v570 = vpack.c.b16 %v557, %v556
    %v571 = vpack.c.b16 %v559, %v558
    %v572 = vpack.c.b16 %v561, %v560
    %v573 = vpack.c.b16 %v563, %v562
    %v574 = vpack.c.b16 %v565, %v564
    %v575 = vpack.c.b16 %v567, %v566
    %584 = vmatprep.subr.bf16.mxu0 0
    %585 = vmatpush1.bf16.msra.mxu0 %v568
    %586 = vmatprep.subr.bf16.mxu0 0
    %587 = vmatpush1.bf16.msra.mxu0 %v569
    %588 = vmatprep.subr.bf16.mxu0 0
    %589 = vmatpush1.bf16.msra.mxu0 %v570
    %590 = vmatprep.subr.bf16.mxu0 0
    %591 = vmatpush1.bf16.msra.mxu0 %v571
    %592 = vmatprep.subr.bf16.mxu0 0
    %593 = vmatpush1.bf16.msra.mxu0 %v572
    %594 = vmatprep.subr.bf16.mxu0 0
    %595 = vmatpush1.bf16.msra.mxu0 %v573
    %596 = vmatprep.subr.bf16.mxu0 0
    %597 = vmatpush1.bf16.msra.mxu0 %v574
    %598 = vmatprep.subr.bf16.mxu0 0
    %599 = vmatpush1.bf16.msra.mxu0 %v575
    %600 = vmatprep.subr.bf16.mxu0 0
    %601 = vmatpush1.bf16.msra.mxu0 0
    %602 = vmatprep.subr.bf16.mxu0 0
    %603 = vmatpush1.bf16.msra.mxu0 0
    %604 = vmatprep.subr.bf16.mxu0 0
    %605 = vmatpush1.bf16.msra.mxu0 0
    %606 = vmatprep.subr.bf16.mxu0 0
    %607 = vmatpush1.bf16.msra.mxu0 0
    %608 = vmatprep.subr.bf16.mxu0 0
    %609 = vmatpush1.bf16.msra.mxu0 0
    %610 = vmatprep.subr.bf16.mxu0 0
    %611 = vmatpush1.bf16.msra.mxu0 0
    %612 = vmatprep.subr.bf16.mxu0 0
    %613 = vmatpush1.bf16.msra.mxu0 0
    %614 = vmatprep.subr.bf16.mxu0 0
    %615 = vmatpush1.bf16.msra.mxu0 0
    %616 = vmatprep.mubr.bf16.mxu0 0
    %617 = vmatmul.mubr.bf16.gmra.mrb[0].mxu0 %v519
    %v618 = vpop.f32.mrb[0].mxu0
    %v619 = vadd.f32 0.0, %v618
    %v620 = vpop.f32.mrb[0].mxu0
    %v621 = vpop.f32.mrb[0].mxu0
    %v622 = vpop.f32.mrb[0].mxu0
    %623 = vdwg.mxu0
    %v624 = vadd.f32 %v362, %v619
    %v625 = vtanh.pop %v624
    %v626 = vsub.f32 %v625, %v107
    %v627 = vld [vmem:[#allocation11] sm:$0xff]
    %v628 = vld [vmem:[#allocation11 + $0x8] sm:$0xff]
    %v629 = vld [vmem:[#allocation11 + $0x10] sm:$0xff]
    %v630 = vld [vmem:[#allocation11 + $0x18] sm:$0xff]
    %v631 = vld [vmem:[#allocation11 + $0x20] sm:$0xff]
    %v632 = vld [vmem:[#allocation11 + $0x28] sm:$0xff]
    %v633 = vld [vmem:[#allocation11 + $0x30] sm:$0xff]
    %v634 = vld [vmem:[#allocation11 + $0x38] sm:$0xff]
    %v635 = vld [vmem:[#allocation11 + $0x40] sm:$0xff]
    %v636 = vld [vmem:[#allocation11 + $0x48] sm:$0xff]
    %v637 = vld [vmem:[#allocation11 + $0x50] sm:$0xff]
    %v638 = vld [vmem:[#allocation11 + $0x58] sm:$0xff]
    %v639 = vld [vmem:[#allocation11 + $0x60] sm:$0xff]
    %v640 = vld [vmem:[#allocation11 + $0x68] sm:$0xff]
    %v641 = vld [vmem:[#allocation11 + $0x70] sm:$0xff]
    %v642 = vld [vmem:[#allocation11 + $0x78] sm:$0xff]
    %643 = vmatprep.subr.mxu0 0.0
    %644 = vmatpush1.msra.mxu0 %v627
    %645 = vmatprep.subr.mxu0 0.0
    %646 = vmatpush1.msra.mxu0 %v628
    %647 = vmatprep.subr.mxu0 0.0
    %648 = vmatpush1.msra.mxu0 %v629
    %649 = vmatprep.subr.mxu0 0.0
    %650 = vmatpush1.msra.mxu0 %v630
    %651 = vmatprep.subr.mxu0 0.0
    %652 = vmatpush1.msra.mxu0 %v631
    %653 = vmatprep.subr.mxu0 0.0
    %654 = vmatpush1.msra.mxu0 %v632
    %655 = vmatprep.subr.mxu0 0.0
    %656 = vmatpush1.msra.mxu0 %v633
    %657 = vmatprep.subr.mxu0 0.0
    %658 = vmatpush1.msra.mxu0 %v634
    %659 = vmatprep.subr.mxu0 0.0
    %660 = vmatpush1.msra.mxu0 %v635
    %661 = vmatprep.subr.mxu0 0.0
    %662 = vmatpush1.msra.mxu0 %v636
    %663 = vmatprep.subr.mxu0 0.0
    %664 = vmatpush1.msra.mxu0 %v637
    %665 = vmatprep.subr.mxu0 0.0
    %666 = vmatpush1.msra.mxu0 %v638
    %667 = vmatprep.subr.mxu0 0.0
    %668 = vmatpush1.msra.mxu0 %v639
    %669 = vmatprep.subr.mxu0 0.0
    %670 = vmatpush1.msra.mxu0 %v640
    %671 = vmatprep.subr.mxu0 0.0
    %672 = vmatpush1.msra.mxu0 %v641
    %673 = vmatprep.subr.mxu0 0.0
    %674 = vmatpush1.msra.mxu0 %v642
    %675 = vmatprep.subr.mxu0 0.0
    %676 = vmatpush1.msra.mxu0 0.0
    %677 = vmatprep.subr.mxu0 0.0
    %678 = vmatpush1.msra.mxu0 0.0
    %679 = vmatprep.subr.mxu0 0.0
    %680 = vmatpush1.msra.mxu0 0.0
    %681 = vmatprep.subr.mxu0 0.0
    %682 = vmatpush1.msra.mxu0 0.0
    %683 = vmatprep.subr.mxu0 0.0
    %684 = vmatpush1.msra.mxu0 0.0
    %685 = vmatprep.subr.mxu0 0.0
    %686 = vmatpush1.msra.mxu0 0.0
    %687 = vmatprep.subr.mxu0 0.0
    %688 = vmatpush1.msra.mxu0 0.0
    %689 = vmatprep.subr.mxu0 0.0
    %690 = vmatpush1.msra.mxu0 0.0
    %691 = vmatprep.subr.mxu0 0.0
    %692 = vmatpush1.msra.mxu0 0.0
    %693 = vmatprep.subr.mxu0 0.0
    %694 = vmatpush1.msra.mxu0 0.0
    %695 = vmatprep.subr.mxu0 0.0
    %696 = vmatpush1.msra.mxu0 0.0
    %697 = vmatprep.subr.mxu0 0.0
    %698 = vmatpush1.msra.mxu0 0.0
    %699 = vmatprep.subr.mxu0 0.0
    %700 = vmatpush1.msra.mxu0 0.0
    %701 = vmatprep.subr.mxu0 0.0
    %702 = vmatpush1.msra.mxu0 0.0
    %703 = vmatprep.subr.mxu0 0.0
    %704 = vmatpush1.msra.mxu0 0.0
    %705 = vmatprep.subr.mxu0 0.0
    %706 = vmatpush1.msra.mxu0 0.0
    %707 = vmatprep.mubr.f32.mxu0 0.0
    %708 = vmatmul.mubr.f32.gmra.mrb[0].mxu0 %v626
    %v709 = vpop.f32.mrb[0].mxu0
    %v710 = vadd.f32 0.0, %v709
    %v711 = vpop.f32.mrb[0].mxu0
    %712 = vdwg.mxu0
    %v713 = vmul.f32 %v510, %v710
    %v714 = vadd.f32 %v107, %v713
    %715 = vst [vmem:[#allocation13] sm:$0xff] %v714
    // Predicated region
    $region54: #{tpu_custom_call.1} parent=1 // pred_check
      _
    $region55: #{tpu_custom_call.1} parent=1 // pred_check_branch
      %717 = sbr.rel (0) target = $region57
    $region56: #{tpu_custom_call.1} parent=1 // pred_region
      %s719 = ssub.s32 128, 128
      %720 = vsyncadd [#allocation4], %s719
      %s722 = sshll.u32 [#allocation13], 4
      %s723 = int_to_ptr.vmem [resolvable:$true] %s722
      %725 = dma.vmem_to_hbm [thread:$0]  %s723, 128, %s7, [#allocation4]
    $region57: #{tpu_custom_call.1} parent=1 // pred_fallthru
      _
    // Predicated region
    $region58: #{tpu_custom_call.1} parent=1 // pred_check
      _
    $region59: #{tpu_custom_call.1} parent=1 // pred_check_branch
      %727 = sbr.rel (0) target = $region61
    $region60: #{tpu_custom_call.1} parent=1 // pred_region
      %728 = dma.done [#allocation4], 128
    $region61: #{tpu_custom_call.1} parent=1 // pred_fallthru
      _
    %729 = vsyncpa [#allocation3], 1
    %730 = vsyncpa [#allocation6], 1
    %731 = vsyncpa [#allocation9], 1
    %732 = vsyncpa [#allocation12], 1
    %733 = vsyncpa [#allocation4], 1

</llo_original>
